<compile_context>
chip_gen: v5e
topology: v5e:2x2
jax: 0.10.0
libtpu: 0.0.40
codegen_flags: <defaults>
</compile_context>

<pallas_src>
import functools

import jax
import jax.numpy as jnp
from jax.experimental import pallas as pl
from jax.experimental.pallas import tpu as pltpu


def _round_up(x, m):
    return ((x + m - 1) // m) * m


def _char_cnn_kernel(ids_ref, r_ref, viota_ref, ebig_ref, wbig_ref, b_ref, o_ref, *, pool):
    """Embedding gather (one-hot matmul) + Conv1d + bias + ReLU + MaxPool1d + channel-major flatten.

    ids_ref   : (TN, nchars)            int32 char ids for TN tokens
    r_ref     : (nchars, nchars*V)      id-spread matrix, R[l, l*V+v] = 1
    viota_ref : (1, nchars*V)           lane pattern v = f % V
    ebig_ref  : (nchars*V, nchars*E)    block-diagonal embedding, Ebig[l*V+v, l*E+e] = emb[v, e]
    wbig_ref  : (nchars*E, pool*C*P)    conv weight with "same" padding folded in, cols = (q, c, p)
    b_ref     : (1, pool*C*P)           bias replicated in the same column order
    o_ref     : (TN, C*P)               channel-major pooled output (c*P + p)
    """
    f32 = jnp.float32
    idsf = ids_ref[...].astype(f32)                                      # (TN, nchars)
    # Spread each id across its V-wide lane block: idswide[n, l*V + v] = ids[n, l].
    idswide = jnp.dot(idsf, r_ref[...], preferred_element_type=f32)      # (TN, nchars*V)
    onehot = (idswide == viota_ref[...]).astype(f32)                     # (TN, nchars*V)
    # Embedding gather on the MXU: x[n, l*E + e] = emb[ids[n, l], e]   (exact: one 1 per block)
    x = jnp.dot(onehot, ebig_ref[...], preferred_element_type=f32)       # (TN, nchars*E)
    # Whole Conv1d (all taps / all kept output positions) as one matmul, then bias + ReLU.
    y = jnp.dot(x, wbig_ref[...], preferred_element_type=f32)            # (TN, pool*C*P)
    y = jnp.maximum(y + b_ref[...], 0.0)
    # MaxPool1d(pool): columns are ordered (q, c, p), so pooling is a max over `pool`
    # contiguous (C*P)-wide slabs and the result is already channel-major (c*P + p).
    CP = o_ref.shape[1]
    out = y[:, 0:CP]
    for q in range(1, pool):
        out = jnp.maximum(out, y[:, q * CP:(q + 1) * CP])
    o_ref[...] = out.astype(o_ref.dtype)


def char_cnn_forward(char_ids, emb_w, conv_w, conv_b, *, kernel_size, num_chars):
    """Full forward of CharacterLevelCNN; all compute (gather/conv/relu/pool/flatten) in Pallas."""
    B, S, nc = char_ids.shape
    assert nc == num_chars
    V, E = emb_w.shape
    C = conv_w.shape[0]
    K = kernel_size
    pad = (K - 1) // 2
    pool = 2 if num_chars >= 4 else 1
    L = num_chars + 2 * pad - K + 1          # conv output length (stride 1)
    P = L // pool                            # pooled length (floor mode)
    N = B * S

    # ---- token tiling: large tiles, >=2 grid steps when possible, pad N to a TN multiple ----
    if N <= 8:
        TN = _round_up(max(N, 1), 8)
    else:
        TN = min(1024, _round_up((N + 1) // 2, 8))
    N_pad = _round_up(N, TN)
    grid = (N_pad // TN,)

    ids = char_ids.reshape(N, num_chars).astype(jnp.int32)
    if N_pad != N:
        ids = jnp.concatenate([ids, jnp.zeros((N_pad - N, num_chars), jnp.int32)], axis=0)

    f32 = jnp.float32
    emb_f = emb_w.astype(f32)

    # ---- constant operands (built once in the wrapper, resident in VMEM across the grid) ----
    # R[l, l*V + v] = 1  (spreads id l across its V-lane block)
    R = jnp.repeat(jnp.eye(num_chars, dtype=f32), V, axis=1)              # (nchars, nchars*V)
    # viota[0, l*V + v] = v
    viota = jnp.tile(jnp.arange(V, dtype=f32), num_chars).reshape(1, num_chars * V)
    # Block-diagonal embedding: Ebig[l*V + v, l*E + e] = emb[v, e]
    Ebig = jnp.kron(jnp.eye(num_chars, dtype=f32), emb_f)                 # (nchars*V, nchars*E)
    # Conv weight with "same" zero padding folded in; output columns ordered (q, c, p):
    #   Wbig[m*E + e, q*(C*P) + c*P + p] = conv_w[c, e, m - (p*pool+q) + pad]   (0 if tap OOB)
    w_t = jnp.transpose(conv_w, (2, 1, 0)).astype(f32)                    # (K, E, C)
    m_idx = jnp.arange(num_chars)
    l_idx = (jnp.arange(P) * pool)[:, None] + jnp.arange(pool)[None, :]   # (P, pool) -> l
    j = m_idx[:, None, None] - l_idx[None, :, :] + pad                    # (nchars, P, pool)
    valid = ((j >= 0) & (j < K)).astype(f32)[..., None, None]
    W5 = w_t[jnp.clip(j, 0, K - 1)] * valid                               # (nchars, P, pool, E, C)
    Wbig = jnp.transpose(W5, (0, 3, 2, 4, 1)).reshape(num_chars * E, pool * C * P)
    # Bias replicated in the same (q, c, p) column order.
    bwide = jnp.broadcast_to(conv_b.astype(f32)[None, :, None], (pool, C, P)).reshape(
        1, pool * C * P)

    flops = 2 * N_pad * (num_chars * num_chars * V
                         + (num_chars * V) * (num_chars * E)
                         + (num_chars * E) * (pool * C * P))
    bytes_accessed = 4 * (ids.size + R.size + viota.size + Ebig.size
                          + Wbig.size + bwide.size + N_pad * C * P)

    kernel = functools.partial(_char_cnn_kernel, pool=pool)
    out = pl.pallas_call(
        kernel,
        out_shape=jax.ShapeDtypeStruct((N_pad, C * P), f32),
        grid_spec=pltpu.PrefetchScalarGridSpec(
            num_scalar_prefetch=0,
            grid=grid,
            in_specs=[
                pl.BlockSpec((TN, num_chars), lambda i: (i, 0)),
                pl.BlockSpec((num_chars, num_chars * V), lambda i: (0, 0)),
                pl.BlockSpec((1, num_chars * V), lambda i: (0, 0)),
                pl.BlockSpec((num_chars * V, num_chars * E), lambda i: (0, 0)),
                pl.BlockSpec((num_chars * E, pool * C * P), lambda i: (0, 0)),
                pl.BlockSpec((1, pool * C * P), lambda i: (0, 0)),
            ],
            out_specs=pl.BlockSpec((TN, C * P), lambda i: (i, 0)),
        ),
        compiler_params=pltpu.CompilerParams(
            dimension_semantics=("parallel",),
            vmem_limit_bytes=32 * 1024 * 1024,
        ),
        cost_estimate=pl.CostEstimate(
            flops=flops, transcendentals=0, bytes_accessed=bytes_accessed),
    )(ids, R, viota, Ebig, Wbig, bwide)

    return out[:N].reshape(B, S, C * P)


def reference_forward(char_ids, emb_w, conv_w, conv_b, *, kernel_size, num_chars):
    """Pure-JAX reference matching the PyTorch forward exactly."""
    B, S, nc = char_ids.shape
    C = conv_w.shape[0]
    pad = (kernel_size - 1) // 2
    pool = 2 if num_chars >= 4 else 1
    N = B * S
    x = jnp.take(emb_w, char_ids.reshape(N, nc), axis=0)   # (N, nc, E)
    x = jnp.transpose(x, (0, 2, 1))                        # (N, E, nc)  == NCW
    y = jax.lax.conv_general_dilated(
        x.astype(jnp.float32), conv_w.astype(jnp.float32),
        window_strides=(1,), padding=[(pad, pad)],
        dimension_numbers=("NCH", "OIH", "NCH"))
    y = jnp.maximum(y + conv_b[None, :, None], 0.0)
    L = y.shape[-1]
    pooled_len = L // pool
    y = y[:, :, :pooled_len * pool].reshape(N, C, pooled_len, pool).max(axis=-1)
    return y.reshape(B, S, -1)


if __name__ == "__main__":
    # Module hyperparameters (small, consistent with the forward pass)
    char_vocab_size = 50
    char_emb_dim = 16
    char_channels = 32
    char_kernel_size = 3
    num_chars = 8
    B, S = 2, 8

    key = jax.random.PRNGKey(0)
    k_emb, k_w, k_b, k_ids = jax.random.split(key, 4)

    # Deterministic synthetic parameters (shapes from nn.Embedding / nn.Conv1d)
    emb_w = 0.1 * jax.random.normal(k_emb, (char_vocab_size, char_emb_dim), jnp.float32)
    conv_w = 0.1 * jax.random.normal(k_w, (char_channels, char_emb_dim, char_kernel_size), jnp.float32)
    conv_b = 0.1 * jax.random.normal(k_b, (char_channels,), jnp.float32)

    # Integer char-id input: (batch, seq_length, num_chars)
    char_ids = jax.random.randint(k_ids, (B, S, num_chars), 0, char_vocab_size, dtype=jnp.int32)

    out = char_cnn_forward(char_ids, emb_w, conv_w, conv_b,
                           kernel_size=char_kernel_size, num_chars=num_chars)
    out = jax.block_until_ready(out)

    ref = reference_forward(char_ids, emb_w, conv_w, conv_b,
                            kernel_size=char_kernel_size, num_chars=num_chars)
    ref = jax.block_until_ready(ref)

    pooled_len = num_chars // 2
    assert out.shape == (B, S, char_channels * pooled_len), out.shape
    assert jnp.allclose(out, ref, atol=1e-4, rtol=1e-4), float(jnp.max(jnp.abs(out - ref)))
    print("KERNEL_OK")
</pallas_src>

<mosaic_0001>
module attributes {stable_mosaic.version = 11 : i64} {
  func.func @_char_cnn_kernel(%arg0: i32, %arg1: memref<8x8xi32, #tpu.memory_space<vmem>>, %arg2: memref<8x400xf32, #tpu.memory_space<vmem>>, %arg3: memref<1x400xf32, #tpu.memory_space<vmem>>, %arg4: memref<400x128xf32, #tpu.memory_space<vmem>>, %arg5: memref<128x256xf32, #tpu.memory_space<vmem>>, %arg6: memref<1x256xf32, #tpu.memory_space<vmem>>, %arg7: memref<8x128xf32, #tpu.memory_space<vmem>>) attributes {dimension_semantics = [#tpu.dimension_semantics<parallel>], iteration_bounds = array<i64: 2>, scalar_prefetch = 0 : i64, scratch_operands = 0 : i64, tpu.core_type = #tpu.core_type<tc>, window_params = [{transform_indices = @transform_0, window_bounds = array<i64: 8, 8>}, {pipeline_mode = #tpu.pipeline_mode<synchronous>, transform_indices = @transform_1, window_bounds = array<i64: 8, 400>}, {pipeline_mode = #tpu.pipeline_mode<synchronous>, transform_indices = @transform_2, window_bounds = array<i64: 1, 400>}, {pipeline_mode = #tpu.pipeline_mode<synchronous>, transform_indices = @transform_3, window_bounds = array<i64: 400, 128>}, {pipeline_mode = #tpu.pipeline_mode<synchronous>, transform_indices = @transform_4, window_bounds = array<i64: 128, 256>}, {pipeline_mode = #tpu.pipeline_mode<synchronous>, transform_indices = @transform_5, window_bounds = array<i64: 1, 256>}, {transform_indices = @transform_6, window_bounds = array<i64: 8, 128>}]} {
    %c0 = arith.constant 0 : index
    %c0_0 = arith.constant 0 : index
    %0 = vector.load %arg1[%c0, %c0_0] : memref<8x8xi32, #tpu.memory_space<vmem>>, vector<8x8xi32>
    %1 = arith.sitofp %0 : vector<8x8xi32> to vector<8x8xf32>
    %c0_1 = arith.constant 0 : index
    %c0_2 = arith.constant 0 : index
    %2 = vector.load %arg2[%c0_1, %c0_2] : memref<8x400xf32, #tpu.memory_space<vmem>>, vector<8x400xf32>
    %cst = arith.constant dense<0.000000e+00> : vector<8x400xf32>
    %3 = tpu.matmul %1, %2, %cst {dimension_numbers = #tpu.dot_dimension_numbers<[1], [0], [0], [1], [0, 0, 1, 1], [], []>} : vector<8x8xf32>, vector<8x400xf32>, vector<8x400xf32> -> vector<8x400xf32>
    %c0_3 = arith.constant 0 : index
    %c0_4 = arith.constant 0 : index
    %4 = vector.load %arg3[%c0_3, %c0_4] : memref<1x400xf32, #tpu.memory_space<vmem>>, vector<1x400xf32>
    %5 = vector.broadcast %4 : vector<1x400xf32> to vector<8x400xf32>
    %6 = arith.cmpf oeq, %3, %5 : vector<8x400xf32>
    %7 = arith.extui %6 : vector<8x400xi1> to vector<8x400xi32>
    %8 = arith.sitofp %7 : vector<8x400xi32> to vector<8x400xf32>
    %c0_5 = arith.constant 0 : index
    %c0_6 = arith.constant 0 : index
    %9 = vector.load %arg4[%c0_5, %c0_6] : memref<400x128xf32, #tpu.memory_space<vmem>>, vector<400x128xf32>
    %cst_7 = arith.constant dense<0.000000e+00> : vector<8x128xf32>
    %10 = tpu.matmul %8, %9, %cst_7 {dimension_numbers = #tpu.dot_dimension_numbers<[1], [0], [0], [1], [0, 0, 1, 1], [], []>} : vector<8x400xf32>, vector<400x128xf32>, vector<8x128xf32> -> vector<8x128xf32>
    %c0_8 = arith.constant 0 : index
    %c0_9 = arith.constant 0 : index
    %11 = vector.load %arg5[%c0_8, %c0_9] : memref<128x256xf32, #tpu.memory_space<vmem>>, vector<128x256xf32>
    %cst_10 = arith.constant dense<0.000000e+00> : vector<8x256xf32>
    %12 = tpu.matmul %10, %11, %cst_10 {dimension_numbers = #tpu.dot_dimension_numbers<[1], [0], [0], [1], [0, 0, 1, 1], [], []>} : vector<8x128xf32>, vector<128x256xf32>, vector<8x256xf32> -> vector<8x256xf32>
    %c0_11 = arith.constant 0 : index
    %c0_12 = arith.constant 0 : index
    %13 = vector.load %arg6[%c0_11, %c0_12] : memref<1x256xf32, #tpu.memory_space<vmem>>, vector<1x256xf32>
    %14 = vector.broadcast %13 : vector<1x256xf32> to vector<8x256xf32>
    %15 = arith.addf %12, %14 : vector<8x256xf32>
    %cst_13 = arith.constant 0.000000e+00 : f32
    %16 = vector.broadcast %cst_13 : f32 to vector<8x256xf32>
    %17 = arith.maximumf %15, %16 : vector<8x256xf32>
    %18 = vector.extract_strided_slice %17 {offsets = [0, 0], sizes = [8, 128], strides = [1, 1]} : vector<8x256xf32> to vector<8x128xf32>
    %19 = vector.extract_strided_slice %17 {offsets = [0, 128], sizes = [8, 128], strides = [1, 1]} : vector<8x256xf32> to vector<8x128xf32>
    %20 = arith.maximumf %18, %19 : vector<8x128xf32>
    %c0_14 = arith.constant 0 : index
    %c0_15 = arith.constant 0 : index
    %21 = vector.load %arg7[%c0_14, %c0_15] : memref<8x128xf32, #tpu.memory_space<vmem>>, vector<8x128xf32>
    tpu.vector_store %arg7[%c0_14, %c0_15], %20 {strides = array<i32>} : memref<8x128xf32, #tpu.memory_space<vmem>>, vector<8x128xf32>,
    return
  }
  func.func @transform_0(%arg0: i32) -> (i32, i32) {
    %c0_i32 = arith.constant 0 : i32
    %c0_i32_0 = arith.constant 0 : i32
    return %arg0, %c0_i32 : i32, i32
  }
  func.func @transform_1(%arg0: i32) -> (i32, i32) {
    %c0_i32 = arith.constant 0 : i32
    %c0_i32_0 = arith.constant 0 : i32
    %c0_i32_1 = arith.constant 0 : i32
    return %c0_i32, %c0_i32_0 : i32, i32
  }
  func.func @transform_2(%arg0: i32) -> (i32, i32) {
    %c0_i32 = arith.constant 0 : i32
    %c0_i32_0 = arith.constant 0 : i32
    %c0_i32_1 = arith.constant 0 : i32
    return %c0_i32, %c0_i32_0 : i32, i32
  }
  func.func @transform_3(%arg0: i32) -> (i32, i32) {
    %c0_i32 = arith.constant 0 : i32
    %c0_i32_0 = arith.constant 0 : i32
    %c0_i32_1 = arith.constant 0 : i32
    return %c0_i32, %c0_i32_0 : i32, i32
  }
  func.func @transform_4(%arg0: i32) -> (i32, i32) {
    %c0_i32 = arith.constant 0 : i32
    %c0_i32_0 = arith.constant 0 : i32
    %c0_i32_1 = arith.constant 0 : i32
    return %c0_i32, %c0_i32_0 : i32, i32
  }
  func.func @transform_5(%arg0: i32) -> (i32, i32) {
    %c0_i32 = arith.constant 0 : i32
    %c0_i32_0 = arith.constant 0 : i32
    %c0_i32_1 = arith.constant 0 : i32
    return %c0_i32, %c0_i32_0 : i32, i32
  }
  func.func @transform_6(%arg0: i32) -> (i32, i32) {
    %c0_i32 = arith.constant 0 : i32
    %c0_i32_0 = arith.constant 0 : i32
    return %arg0, %c0_i32 : i32, i32
  }
}

</mosaic_0001>

<llo_original>
// kernel: tpu_custom_call.1
$region0: #{tpu_custom_call.1}
  #allocation0 [shape = 'u32[]', space=smem, size = 0x4, offset = 0x4, fixed_abs, tag = 'smem constant byte address 0x4 - core index']
  #allocation1 [shape = 'u32[72,128]{1,0:T(1,128)}', space=vmem, size = 0x9000, scoped, tag = 'internal scratch']
  %s0 = inlined_call_operand.vmem [shape: s32[16,8], index: 0, kind: input, shape index: {}]
  %s1 = inlined_call_operand.hbm [shape: f32[8,400], index: 1, kind: input, shape index: {}]
  %s2 = inlined_call_operand.vmem [shape: f32[1,400], index: 2, kind: input, shape index: {}]
  %s3 = inlined_call_operand.hbm [shape: f32[400,128], index: 3, kind: input, shape index: {}]
  %s4 = inlined_call_operand.hbm [shape: f32[128,256], index: 4, kind: input, shape index: {}]
  %s5 = inlined_call_operand.vmem [shape: f32[1,256], index: 5, kind: input, shape index: {}]
  %s6 = inlined_call_operand.hbm [shape: f32[16,128], index: 6, kind: output, shape index: {}]
  %s7 = sld [smem:[#allocation0]]
  $region69: #{tpu_custom_call.1} parent=0
    _
  %s9 = ssub.s32 1, %s7
  %s10 = scalar_select 0, %s9, %s7
  $region1: #{tpu_custom_call.1} parent=0
    #allocation2 [shape = 'u8[16384]{0}', space=vmem, size = 0x4000, scoped, tag = 'input window, operand 1, single buffered']
    #allocation3 [shape = 's32[2]{0}', space=sflag, size = 0x8, scoped, tag = 'scoped memory for tpu_custom_call.1']
    #allocation4 [shape = 's32[2]{0}', space=sflag, size = 0x8, scoped, tag = 'scoped memory for tpu_custom_call.1']
    #allocation5 [shape = 'u8[204800]{0}', space=vmem, size = 0x32000, scoped, tag = 'input window, operand 3, single buffered']
    #allocation6 [shape = 's32[1]{0}', space=sflag, size = 0x4, scoped, tag = 'scoped memory for tpu_custom_call.1']
    #allocation7 [shape = 'u8[131072]{0}', space=vmem, size = 0x20000, scoped, tag = 'input window, operand 4, single buffered']
    #allocation8 [shape = 'u8[8192]{0}', space=vmem, size = 0x2000, scoped, tag = 'output window, operand 0']
    %11 = vsyncpa [#allocation3], 0
    %12 = vsyncpa [#allocation6], 0
    %13 = vsyncpa [#allocation4], 0
    %s14 = scalar_lea.sflag [#allocation4], 1
    %15 = vsyncpa %s14, 0
    loop: start=0, step=1, limit=4
    $region2: #{tpu_custom_call.1} parent=1 // loop_pre_header
      _
    $region3: #{tpu_custom_call.1} parent=1 // loop_header
      %s17 = sphi 0, %s21
      %p18 = scmp.ge.s32.totalorder %s17, 4
      %s27 = sphi 0, %s29
      %s30 = sphi 0, %s27
      %s31 = sphi 0, %s30
      %s47 = sphi 0, %s31
      %s51 = sphi 0, %s51
      %s53 = sphi 0, %s51
      %s54 = sphi 0, %s53
      %s68 = sphi 0, %s54
      %s72 = sphi 0, %s72
      %s74 = sphi 0, %s72
      %s75 = sphi 0, %s74
      %s89 = sphi 0, %s75
      %s93 = sphi 0, %s93
      %s95 = sphi 0, %s93
      %s96 = sphi 0, %s95
      %s110 = sphi 0, %s96
      %s114 = sphi 0, %s114
      %s116 = sphi 0, %s114
      %s117 = sphi 0, %s116
      %s131 = sphi 0, %s117
      %s135 = sphi 0, %s135
      %s137 = sphi 0, %s135
      %s138 = sphi 0, %s137
      %s152 = sphi 0, %s138
      %s158 = sphi 0, %s160
      %s161 = sphi 0, %s158
      %s162 = sphi 0, %s161
      %s178 = sphi 0, %s162
    $region4: #{tpu_custom_call.1} parent=1 // loop_header_branch
      %20 = sbr.rel (%p18) target = $region8
    $region5: #{tpu_custom_call.1} parent=1 // loop_body
      %s22 = ssub.s32 %s17, 1
      %s23 = ssub.s32 %s17, 2
      %s24 = sadd.s32 %s17, 1
      %s25 = ssub.s32 %s17, %s24
      %p26 = scmp.eq.s32.totalorder %s25, 0
      %s28 = sadd.s32 %s27, 1
      %s29 = scalar_select %p26, %s27, %s28
      %p32 = pneg %p26
      %p33 = scmp.eq.s32.totalorder %s17, 1
      %p34 = por %p32, %p33
      %p35 = scmp.ne.s32.totalorder %s27, %s30
      %p36 = scmp.eq.s32.totalorder %s17, 0
      %p37 = por %p35, %p36
      %p38 = scmp.ne.s32.totalorder %s27, %s30
      %p39 = scmp.eq.s32.totalorder %s22, 1
      %p40 = por %p38, %p39
      %p41 = scmp.ne.s32.totalorder %s30, %s31
      %p42 = scmp.eq.s32.totalorder %s22, 0
      %p43 = por %p41, %p42
      %p44 = scmp.ne.s32.totalorder %s30, %s31
      %p45 = scmp.eq.s32.totalorder %s23, 1
      %p46 = por %p44, %p45
      %p48 = scmp.ne.s32.totalorder %s31, %s47
      %p49 = scmp.eq.s32.totalorder %s23, 0
      %p50 = por %p48, %p49
      %s52 = sadd.s32 %s51, 1
      %p55 = scmp.eq.s32.totalorder %s17, 1
      %p56 = scmp.ne.s32.totalorder %s51, %s53
      %p57 = scmp.eq.s32.totalorder %s17, 0
      %p58 = por %p56, %p57
      %p59 = scmp.ne.s32.totalorder %s51, %s53
      %p60 = scmp.eq.s32.totalorder %s22, 1
      %p61 = por %p59, %p60
      %p62 = scmp.ne.s32.totalorder %s53, %s54
      %p63 = scmp.eq.s32.totalorder %s22, 0
      %p64 = por %p62, %p63
      %p65 = scmp.ne.s32.totalorder %s53, %s54
      %p66 = scmp.eq.s32.totalorder %s23, 1
      %p67 = por %p65, %p66
      %p69 = scmp.ne.s32.totalorder %s54, %s68
      %p70 = scmp.eq.s32.totalorder %s23, 0
      %p71 = por %p69, %p70
      %s73 = sadd.s32 %s72, 1
      %p76 = scmp.eq.s32.totalorder %s17, 1
      %p77 = scmp.ne.s32.totalorder %s72, %s74
      %p78 = scmp.eq.s32.totalorder %s17, 0
      %p79 = por %p77, %p78
      %p80 = scmp.ne.s32.totalorder %s72, %s74
      %p81 = scmp.eq.s32.totalorder %s22, 1
      %p82 = por %p80, %p81
      %p83 = scmp.ne.s32.totalorder %s74, %s75
      %p84 = scmp.eq.s32.totalorder %s22, 0
      %p85 = por %p83, %p84
      %p86 = scmp.ne.s32.totalorder %s74, %s75
      %p87 = scmp.eq.s32.totalorder %s23, 1
      %p88 = por %p86, %p87
      %p90 = scmp.ne.s32.totalorder %s75, %s89
      %p91 = scmp.eq.s32.totalorder %s23, 0
      %p92 = por %p90, %p91
      %s94 = sadd.s32 %s93, 1
      %p97 = scmp.eq.s32.totalorder %s17, 1
      %p98 = scmp.ne.s32.totalorder %s93, %s95
      %p99 = scmp.eq.s32.totalorder %s17, 0
      %p100 = por %p98, %p99
      %p101 = scmp.ne.s32.totalorder %s93, %s95
      %p102 = scmp.eq.s32.totalorder %s22, 1
      %p103 = por %p101, %p102
      %p104 = scmp.ne.s32.totalorder %s95, %s96
      %p105 = scmp.eq.s32.totalorder %s22, 0
      %p106 = por %p104, %p105
      %p107 = scmp.ne.s32.totalorder %s95, %s96
      %p108 = scmp.eq.s32.totalorder %s23, 1
      %p109 = por %p107, %p108
      %p111 = scmp.ne.s32.totalorder %s96, %s110
      %p112 = scmp.eq.s32.totalorder %s23, 0
      %p113 = por %p111, %p112
      %s115 = sadd.s32 %s114, 1
      %p118 = scmp.eq.s32.totalorder %s17, 1
      %p119 = scmp.ne.s32.totalorder %s114, %s116
      %p120 = scmp.eq.s32.totalorder %s17, 0
      %p121 = por %p119, %p120
      %p122 = scmp.ne.s32.totalorder %s114, %s116
      %p123 = scmp.eq.s32.totalorder %s22, 1
      %p124 = por %p122, %p123
      %p125 = scmp.ne.s32.totalorder %s116, %s117
      %p126 = scmp.eq.s32.totalorder %s22, 0
      %p127 = por %p125, %p126
      %p128 = scmp.ne.s32.totalorder %s116, %s117
      %p129 = scmp.eq.s32.totalorder %s23, 1
      %p130 = por %p128, %p129
      %p132 = scmp.ne.s32.totalorder %s117, %s131
      %p133 = scmp.eq.s32.totalorder %s23, 0
      %p134 = por %p132, %p133
      %s136 = sadd.s32 %s135, 1
      %p139 = scmp.eq.s32.totalorder %s17, 1
      %p140 = scmp.ne.s32.totalorder %s135, %s137
      %p141 = scmp.eq.s32.totalorder %s17, 0
      %p142 = por %p140, %p141
      %p143 = scmp.ne.s32.totalorder %s135, %s137
      %p144 = scmp.eq.s32.totalorder %s22, 1
      %p145 = por %p143, %p144
      %p146 = scmp.ne.s32.totalorder %s137, %s138
      %p147 = scmp.eq.s32.totalorder %s22, 0
      %p148 = por %p146, %p147
      %p149 = scmp.ne.s32.totalorder %s137, %s138
      %p150 = scmp.eq.s32.totalorder %s23, 1
      %p151 = por %p149, %p150
      %p153 = scmp.ne.s32.totalorder %s138, %s152
      %p154 = scmp.eq.s32.totalorder %s23, 0
      %p155 = por %p153, %p154
      %s156 = ssub.s32 %s17, %s24
      %p157 = scmp.eq.s32.totalorder %s156, 0
      %s159 = sadd.s32 %s158, 1
      %s160 = scalar_select %p157, %s158, %s159
      %p163 = pneg %p157
      %p164 = scmp.eq.s32.totalorder %s17, 1
      %p165 = por %p163, %p164
      %p166 = scmp.ne.s32.totalorder %s158, %s161
      %p167 = scmp.eq.s32.totalorder %s17, 0
      %p168 = por %p166, %p167
      %p169 = scmp.ne.s32.totalorder %s158, %s161
      %p170 = scmp.eq.s32.totalorder %s22, 1
      %p171 = por %p169, %p170
      %p172 = scmp.ne.s32.totalorder %s161, %s162
      %p173 = scmp.eq.s32.totalorder %s22, 0
      %p174 = por %p172, %p173
      %p175 = scmp.ne.s32.totalorder %s161, %s162
      %p176 = scmp.eq.s32.totalorder %s23, 1
      %p177 = por %p175, %p176
      %p179 = scmp.ne.s32.totalorder %s162, %s178
      %p180 = scmp.eq.s32.totalorder %s23, 0
      %p181 = por %p179, %p180
      %p182 = scmp.le.s32.totalorder 1, %s17
      %p183 = scmp.lt.s32.totalorder %s17, 3
      %p184 = pnand %p182, %p183
      %p185 = pneg %p184
      // Predicated region
      $region9: #{tpu_custom_call.1} parent=5 // pred_check
        _
      $region10: #{tpu_custom_call.1} parent=5 // pred_check_branch
        %187 = sbr.rel (%p184) target = $region12
      $region11: #{tpu_custom_call.1} parent=5 // pred_region
        %s188 = ssub.s32 %s17, 1
        // Predicated region
        $region13: #{tpu_custom_call.1} parent=11 // pred_check
          %p189 = pneg %p64
        $region14: #{tpu_custom_call.1} parent=11 // pred_check_branch
          %191 = sbr.rel (%p189) target = $region16
        $region15: #{tpu_custom_call.1} parent=11 // pred_region
          %193 = vsyncadd [#allocation3], 0
          %s195 = sshll.u32 %s1, 4
          %s196 = int_to_ptr.hbm [resolvable:$true] %s195
          %s197 = sshll.u32 [#allocation2], 4
          %s198 = int_to_ptr.vmem [resolvable:$true] %s197
          %200 = dma.hbm_to_vmem [thread:$0]  %s196, 512, %s198, [#allocation3]
        $region16: #{tpu_custom_call.1} parent=11 // pred_fallthru
          _
        // Predicated region
        $region17: #{tpu_custom_call.1} parent=11 // pred_check
          %p201 = pneg %p85
        $region18: #{tpu_custom_call.1} parent=11 // pred_check_branch
          %203 = sbr.rel (%p201) target = $region20
        $region19: #{tpu_custom_call.1} parent=11 // pred_region
          _
        $region20: #{tpu_custom_call.1} parent=11 // pred_fallthru
          _
        // Predicated region
        $region21: #{tpu_custom_call.1} parent=11 // pred_check
          %p204 = pneg %p106
        $region22: #{tpu_custom_call.1} parent=11 // pred_check_branch
          %206 = sbr.rel (%p204) target = $region24
        $region23: #{tpu_custom_call.1} parent=11 // pred_region
          %208 = vsyncadd [#allocation6], 0
          %s209 = sshll.u32 %s3, 4
          %s210 = int_to_ptr.hbm [resolvable:$true] %s209
          %s211 = sshll.u32 [#allocation5], 4
          %s212 = int_to_ptr.vmem [resolvable:$true] %s211
          %217 = dma.hbm_to_vmem [thread:$0]  %s210, 6400, %s212, [#allocation6], 128, 128, 8
        $region24: #{tpu_custom_call.1} parent=11 // pred_fallthru
          _
        // Predicated region
        $region25: #{tpu_custom_call.1} parent=11 // pred_check
          %p218 = pneg %p127
        $region26: #{tpu_custom_call.1} parent=11 // pred_check_branch
          %220 = sbr.rel (%p218) target = $region28
        $region27: #{tpu_custom_call.1} parent=11 // pred_region
          %222 = vsyncadd [#allocation6], 0
          %s223 = sshll.u32 %s4, 4
          %s224 = int_to_ptr.hbm [resolvable:$true] %s223
          %s225 = sshll.u32 [#allocation7], 4
          %s226 = int_to_ptr.vmem [resolvable:$true] %s225
          %231 = dma.hbm_to_vmem [thread:$0]  %s224, 4096, %s226, [#allocation6], 256, 256, 16
        $region28: #{tpu_custom_call.1} parent=11 // pred_fallthru
          _
        // Predicated region
        $region29: #{tpu_custom_call.1} parent=11 // pred_check
          %p232 = pneg %p148
        $region30: #{tpu_custom_call.1} parent=11 // pred_check_branch
          %234 = sbr.rel (%p232) target = $region32
        $region31: #{tpu_custom_call.1} parent=11 // pred_region
          _
        $region32: #{tpu_custom_call.1} parent=11 // pred_fallthru
          _
      $region12: #{tpu_custom_call.1} parent=5 // pred_fallthru
        _
      %p235 = scmp.lt.s32.totalorder %s17, 2
      // Predicated region
      $region33: #{tpu_custom_call.1} parent=5 // pred_check
        %p236 = pneg %p235
      $region34: #{tpu_custom_call.1} parent=5 // pred_check_branch
        %238 = sbr.rel (%p236) target = $region36
      $region35: #{tpu_custom_call.1} parent=5 // pred_region
        // Predicated region
        $region37: #{tpu_custom_call.1} parent=35 // pred_check
          %p239 = pneg %p37
        $region38: #{tpu_custom_call.1} parent=35 // pred_check_branch
          %241 = sbr.rel (%p239) target = $region40
        $region39: #{tpu_custom_call.1} parent=35 // pred_region
          %p242 = scmp.lt.s32.totalorder %s17, 1
          %s243 = scalar_select %p242, %s17, 1
          %s244 = smul.addr %s243, 8
          %s245 = scalar_lea.vmem %s0, %s244
        $region40: #{tpu_custom_call.1} parent=35 // pred_fallthru
          _
      $region36: #{tpu_custom_call.1} parent=5 // pred_fallthru
        _
      %p246 = scmp.le.s32.totalorder 1, %s17
      %p247 = scmp.lt.s32.totalorder %s17, 3
      %p248 = pnand %p246, %p247
      %p249 = pneg %p248
      // Predicated region
      $region41: #{tpu_custom_call.1} parent=5 // pred_check
        _
      $region42: #{tpu_custom_call.1} parent=5 // pred_check_branch
        %251 = sbr.rel (%p248) target = $region44
      $region43: #{tpu_custom_call.1} parent=5 // pred_region
        %s252 = ssub.s32 %s17, 1
        // Predicated region
        $region45: #{tpu_custom_call.1} parent=43 // pred_check
          %p253 = pneg %p64
        $region46: #{tpu_custom_call.1} parent=43 // pred_check_branch
          %255 = sbr.rel (%p253) target = $region48
        $region47: #{tpu_custom_call.1} parent=43 // pred_region
          %257 = dma.done [#allocation3], 512
        $region48: #{tpu_custom_call.1} parent=43 // pred_fallthru
          _
        // Predicated region
        $region49: #{tpu_custom_call.1} parent=43 // pred_check
          %p258 = pneg %p106
        $region50: #{tpu_custom_call.1} parent=43 // pred_check_branch
          %260 = sbr.rel (%p258) target = $region52
        $region51: #{tpu_custom_call.1} parent=43 // pred_region
          %262 = dma.done [#allocation6], 6400
        $region52: #{tpu_custom_call.1} parent=43 // pred_fallthru
          _
        // Predicated region
        $region53: #{tpu_custom_call.1} parent=43 // pred_check
          %p263 = pneg %p127
        $region54: #{tpu_custom_call.1} parent=43 // pred_check_branch
          %265 = sbr.rel (%p263) target = $region56
        $region55: #{tpu_custom_call.1} parent=43 // pred_region
          %267 = dma.done [#allocation6], 4096
        $region56: #{tpu_custom_call.1} parent=43 // pred_fallthru
          _
        %p268 = scmp.lt.s32.totalorder %s22, 1
        %s269 = scalar_select %p268, %s22, 1
        %s270 = smul.addr %s269, 8
        %s271 = scalar_lea.vmem %s0, %s270
        %p272 = pneg %p43
        %p273 = pneg %p40
        %p274 = pneg %p64
        %p275 = pneg %p61
        %p276 = pneg %p85
        %p277 = pneg %p82
        %p278 = pneg %p106
        %p279 = pneg %p103
        %p280 = pneg %p127
        %p281 = pneg %p124
        %p282 = pneg %p148
        %p283 = pneg %p145
        %p284 = pneg %p174
        %p285 = pneg %p171
        %s286 = sand.u32 %s161, 1
        %s287 = scalar_lea.sflag [#allocation4], %s286
        %s288 = sand.u32 %s161, 1
        %s289 = smul.addr %s288, 8
        %s290 = scalar_lea.vmem [#allocation8], %s289
        %p291 = scmp.lt.s32.totalorder %s22, 1
        %s292 = scalar_select %p291, %s22, 1
        %s293 = smul.addr %s292, 8
        %s294 = scalar_lea.vmem %s0, %s293
        %v295 = vld [vmem:[%s294] sm:$0xff]
        %v296 = vcvt.s32.f32 %v295
        %v297 = vld [vmem:[#allocation2] sm:$0xff]
        %v298 = vld [vmem:[#allocation2 + $0x8] sm:$0xff]
        %v299 = vld [vmem:[#allocation2 + $0x10] sm:$0xff]
        %v300 = vld [vmem:[#allocation2 + $0x18] sm:$0xff]
        %vm301 = vcmask 64512
        %v303 = vsel %vm301, %v296, 0
        %305 = vmatpush.msra.mxu0 0.0
        %306 = vmatpush.msra.mxu0 0.0
        %307 = vmatpush.msra.mxu0 0.0
        %308 = vmatpush.msra.mxu0 0.0
        %309 = vmatpush.msra.mxu0 0.0
        %310 = vmatpush.msra.mxu0 0.0
        %311 = vmatpush.msra.mxu0 0.0
        %312 = vmatpush.msra.mxu0 0.0
        %313 = vmatpush.msra.mxu0 0.0
        %314 = vmatpush.msra.mxu0 0.0
        %315 = vmatpush.msra.mxu0 0.0
        %316 = vmatpush.msra.mxu0 0.0
        %317 = vmatpush.msra.mxu0 0.0
        %318 = vmatpush.msra.mxu0 0.0
        %319 = vmatpush.msra.mxu0 0.0
        %320 = vmatpush.msra.mxu0 %v297
        %321 = vmatmul.f32.gmra.mxu0 %v303
        %v322 = vpop.f32.mrf.mxu0
        %v323 = vadd.f32 0.0, %v322
        %324 = vdwg.mxu0
        %325 = vmatpush.msra.mxu0 0.0
        %326 = vmatpush.msra.mxu0 0.0
        %327 = vmatpush.msra.mxu0 0.0
        %328 = vmatpush.msra.mxu0 0.0
        %329 = vmatpush.msra.mxu0 0.0
        %330 = vmatpush.msra.mxu0 0.0
        %331 = vmatpush.msra.mxu0 0.0
        %332 = vmatpush.msra.mxu0 0.0
        %333 = vmatpush.msra.mxu0 0.0
        %334 = vmatpush.msra.mxu0 0.0
        %335 = vmatpush.msra.mxu0 0.0
        %336 = vmatpush.msra.mxu0 0.0
        %337 = vmatpush.msra.mxu0 0.0
        %338 = vmatpush.msra.mxu0 0.0
        %339 = vmatpush.msra.mxu0 0.0
        %340 = vmatpush.msra.mxu0 %v298
        %341 = vmatmul.f32.gmra.mxu0 %v303
        %v342 = vpop.f32.mrf.mxu0
        %v343 = vadd.f32 0.0, %v342
        %344 = vdwg.mxu0
        %345 = vmatpush.msra.mxu0 0.0
        %346 = vmatpush.msra.mxu0 0.0
        %347 = vmatpush.msra.mxu0 0.0
        %348 = vmatpush.msra.mxu0 0.0
        %349 = vmatpush.msra.mxu0 0.0
        %350 = vmatpush.msra.mxu0 0.0
        %351 = vmatpush.msra.mxu0 0.0
        %352 = vmatpush.msra.mxu0 0.0
        %353 = vmatpush.msra.mxu0 0.0
        %354 = vmatpush.msra.mxu0 0.0
        %355 = vmatpush.msra.mxu0 0.0
        %356 = vmatpush.msra.mxu0 0.0
        %357 = vmatpush.msra.mxu0 0.0
        %358 = vmatpush.msra.mxu0 0.0
        %359 = vmatpush.msra.mxu0 0.0
        %360 = vmatpush.msra.mxu0 %v299
        %361 = vmatmul.f32.gmra.mxu0 %v303
        %v362 = vpop.f32.mrf.mxu0
        %v363 = vadd.f32 0.0, %v362
        %364 = vdwg.mxu0
        %365 = vmatpush.msra.mxu0 0.0
        %366 = vmatpush.msra.mxu0 0.0
        %367 = vmatpush.msra.mxu0 0.0
        %368 = vmatpush.msra.mxu0 0.0
        %369 = vmatpush.msra.mxu0 0.0
        %370 = vmatpush.msra.mxu0 0.0
        %371 = vmatpush.msra.mxu0 0.0
        %372 = vmatpush.msra.mxu0 0.0
        %373 = vmatpush.msra.mxu0 0.0
        %374 = vmatpush.msra.mxu0 0.0
        %375 = vmatpush.msra.mxu0 0.0
        %376 = vmatpush.msra.mxu0 0.0
        %377 = vmatpush.msra.mxu0 0.0
        %378 = vmatpush.msra.mxu0 0.0
        %379 = vmatpush.msra.mxu0 0.0
        %380 = vmatpush.msra.mxu0 %v300
        %381 = vmatmul.f32.gmra.mxu0 %v303
        %v382 = vpop.f32.mrf.mxu0
        %v383 = vadd.f32 0.0, %v382
        %384 = vdwg.mxu0
        %v385 = vld [vmem:[%s2] sm:$0xf]
        %v387 = vperm.slane %v385, 0
        %v388 = vperm.slane %v385, 1
        %v389 = vperm.slane %v385, 2
        %v390 = vperm.slane %v385, 3
        %vm395 = vcmp.eq.f32.partialorder %v323, %v387
        %vm396 = vcmp.eq.f32.partialorder %v343, %v388
        %vm397 = vcmp.eq.f32.partialorder %v363, %v389
        %vm398 = vcmp.eq.f32.partialorder %v383, %v390
        %v399 = vsel %vm395, 1, 0
        %v400 = vsel %vm396, 1, 0
        %v401 = vsel %vm397, 1, 0
        %v402 = vsel %vm398, 1, 0
        %v403 = vcvt.s32.f32 %v399
        %v404 = vcvt.s32.f32 %v400
        %v405 = vcvt.s32.f32 %v401
        %v406 = vcvt.s32.f32 %v402
        %v407 = vld [vmem:[#allocation5] sm:$0xff]
        %v408 = vld [vmem:[#allocation5 + $0x8] sm:$0xff]
        %v409 = vld [vmem:[#allocation5 + $0x10] sm:$0xff]
        %v410 = vld [vmem:[#allocation5 + $0x18] sm:$0xff]
        %v411 = vld [vmem:[#allocation5 + $0x20] sm:$0xff]
        %v412 = vld [vmem:[#allocation5 + $0x28] sm:$0xff]
        %v413 = vld [vmem:[#allocation5 + $0x30] sm:$0xff]
        %v414 = vld [vmem:[#allocation5 + $0x38] sm:$0xff]
        %v415 = vld [vmem:[#allocation5 + $0x40] sm:$0xff]
        %v416 = vld [vmem:[#allocation5 + $0x48] sm:$0xff]
        %v417 = vld [vmem:[#allocation5 + $0x50] sm:$0xff]
        %v418 = vld [vmem:[#allocation5 + $0x58] sm:$0xff]
        %v419 = vld [vmem:[#allocation5 + $0x60] sm:$0xff]
        %v420 = vld [vmem:[#allocation5 + $0x68] sm:$0xff]
        %v421 = vld [vmem:[#allocation5 + $0x70] sm:$0xff]
        %v422 = vld [vmem:[#allocation5 + $0x78] sm:$0xff]
        %v423 = vld [vmem:[#allocation5 + $0x80] sm:$0xff]
        %v424 = vld [vmem:[#allocation5 + $0x88] sm:$0xff]
        %v425 = vld [vmem:[#allocation5 + $0x90] sm:$0xff]
        %v426 = vld [vmem:[#allocation5 + $0x98] sm:$0xff]
        %v427 = vld [vmem:[#allocation5 + $0xa0] sm:$0xff]
        %v428 = vld [vmem:[#allocation5 + $0xa8] sm:$0xff]
        %v429 = vld [vmem:[#allocation5 + $0xb0] sm:$0xff]
        %v430 = vld [vmem:[#allocation5 + $0xb8] sm:$0xff]
        %v431 = vld [vmem:[#allocation5 + $0xc0] sm:$0xff]
        %v432 = vld [vmem:[#allocation5 + $0xc8] sm:$0xff]
        %v433 = vld [vmem:[#allocation5 + $0xd0] sm:$0xff]
        %v434 = vld [vmem:[#allocation5 + $0xd8] sm:$0xff]
        %v435 = vld [vmem:[#allocation5 + $0xe0] sm:$0xff]
        %v436 = vld [vmem:[#allocation5 + $0xe8] sm:$0xff]
        %v437 = vld [vmem:[#allocation5 + $0xf0] sm:$0xff]
        %v438 = vld [vmem:[#allocation5 + $0xf8] sm:$0xff]
        %v439 = vld [vmem:[#allocation5 + $0x100] sm:$0xff]
        %v440 = vld [vmem:[#allocation5 + $0x108] sm:$0xff]
        %v441 = vld [vmem:[#allocation5 + $0x110] sm:$0xff]
        %v442 = vld [vmem:[#allocation5 + $0x118] sm:$0xff]
        %v443 = vld [vmem:[#allocation5 + $0x120] sm:$0xff]
        %v444 = vld [vmem:[#allocation5 + $0x128] sm:$0xff]
        %v445 = vld [vmem:[#allocation5 + $0x130] sm:$0xff]
        %v446 = vld [vmem:[#allocation5 + $0x138] sm:$0xff]
        %v447 = vld [vmem:[#allocation5 + $0x140] sm:$0xff]
        %v448 = vld [vmem:[#allocation5 + $0x148] sm:$0xff]
        %v449 = vld [vmem:[#allocation5 + $0x150] sm:$0xff]
        %v450 = vld [vmem:[#allocation5 + $0x158] sm:$0xff]
        %v451 = vld [vmem:[#allocation5 + $0x160] sm:$0xff]
        %v452 = vld [vmem:[#allocation5 + $0x168] sm:$0xff]
        %v453 = vld [vmem:[#allocation5 + $0x170] sm:$0xff]
        %v454 = vld [vmem:[#allocation5 + $0x178] sm:$0xff]
        %v455 = vld [vmem:[#allocation5 + $0x180] sm:$0xff]
        %v456 = vld [vmem:[#allocation5 + $0x188] sm:$0xff]
        %vm457 = vcmask 130048
        %v459 = vsel %vm457, %v406, 0
        %461 = vmatpush.msra.mxu0 %v422
        %462 = vmatpush.msra.mxu0 %v421
        %463 = vmatpush.msra.mxu0 %v420
        %464 = vmatpush.msra.mxu0 %v419
        %465 = vmatpush.msra.mxu0 %v418
        %466 = vmatpush.msra.mxu0 %v417
        %467 = vmatpush.msra.mxu0 %v416
        %468 = vmatpush.msra.mxu0 %v415
        %469 = vmatpush.msra.mxu0 %v414
        %470 = vmatpush.msra.mxu0 %v413
        %471 = vmatpush.msra.mxu0 %v412
        %472 = vmatpush.msra.mxu0 %v411
        %473 = vmatpush.msra.mxu0 %v410
        %474 = vmatpush.msra.mxu0 %v409
        %475 = vmatpush.msra.mxu0 %v408
        %476 = vmatpush.msra.mxu0 %v407
        %477 = vmatmul.f32.gmra.mxu0 %v403
        %v478 = vpop.f32.mrf.mxu0
        %v479 = vadd.f32 0.0, %v478
        %480 = vdwg.mxu0
        %481 = vmatpush.msra.mxu0 %v438
        %482 = vmatpush.msra.mxu0 %v437
        %483 = vmatpush.msra.mxu0 %v436
        %484 = vmatpush.msra.mxu0 %v435
        %485 = vmatpush.msra.mxu0 %v434
        %486 = vmatpush.msra.mxu0 %v433
        %487 = vmatpush.msra.mxu0 %v432
        %488 = vmatpush.msra.mxu0 %v431
        %489 = vmatpush.msra.mxu0 %v430
        %490 = vmatpush.msra.mxu0 %v429
        %491 = vmatpush.msra.mxu0 %v428
        %492 = vmatpush.msra.mxu0 %v427
        %493 = vmatpush.msra.mxu0 %v426
        %494 = vmatpush.msra.mxu0 %v425
        %495 = vmatpush.msra.mxu0 %v424
        %496 = vmatpush.msra.mxu0 %v423
        %497 = vmatmul.f32.gmra.mxu0 %v404
        %v498 = vpop.f32.mrf.mxu0
        %v499 = vadd.f32 %v479, %v498
        %500 = vdwg.mxu0
        %501 = vmatpush.msra.mxu0 %v454
        %502 = vmatpush.msra.mxu0 %v453
        %503 = vmatpush.msra.mxu0 %v452
        %504 = vmatpush.msra.mxu0 %v451
        %505 = vmatpush.msra.mxu0 %v450
        %506 = vmatpush.msra.mxu0 %v449
        %507 = vmatpush.msra.mxu0 %v448
        %508 = vmatpush.msra.mxu0 %v447
        %509 = vmatpush.msra.mxu0 %v446
        %510 = vmatpush.msra.mxu0 %v445
        %511 = vmatpush.msra.mxu0 %v444
        %512 = vmatpush.msra.mxu0 %v443
        %513 = vmatpush.msra.mxu0 %v442
        %514 = vmatpush.msra.mxu0 %v441
        %515 = vmatpush.msra.mxu0 %v440
        %516 = vmatpush.msra.mxu0 %v439
        %517 = vmatmul.f32.gmra.mxu0 %v405
        %v518 = vpop.f32.mrf.mxu0
        %v519 = vadd.f32 %v499, %v518
        %520 = vdwg.mxu0
        %521 = vmatpush.msra.mxu0 0.0
        %522 = vmatpush.msra.mxu0 0.0
        %523 = vmatpush.msra.mxu0 0.0
        %524 = vmatpush.msra.mxu0 0.0
        %525 = vmatpush.msra.mxu0 0.0
        %526 = vmatpush.msra.mxu0 0.0
        %527 = vmatpush.msra.mxu0 0.0
        %528 = vmatpush.msra.mxu0 0.0
        %529 = vmatpush.msra.mxu0 0.0
        %530 = vmatpush.msra.mxu0 0.0
        %531 = vmatpush.msra.mxu0 0.0
        %532 = vmatpush.msra.mxu0 0.0
        %533 = vmatpush.msra.mxu0 0.0
        %534 = vmatpush.msra.mxu0 0.0
        %535 = vmatpush.msra.mxu0 %v456
        %536 = vmatpush.msra.mxu0 %v455
        %537 = vmatmul.f32.gmra.mxu0 %v459
        %v538 = vpop.f32.mrf.mxu0
        %v539 = vadd.f32 %v519, %v538
        %540 = vdwg.mxu0
        %v541 = vld [vmem:[#allocation7] sm:$0xff]
        %v542 = vld [vmem:[#allocation7 + $0x8] sm:$0xff]
        %v543 = vld [vmem:[#allocation7 + $0x10] sm:$0xff]
        %v544 = vld [vmem:[#allocation7 + $0x18] sm:$0xff]
        %v545 = vld [vmem:[#allocation7 + $0x20] sm:$0xff]
        %v546 = vld [vmem:[#allocation7 + $0x28] sm:$0xff]
        %v547 = vld [vmem:[#allocation7 + $0x30] sm:$0xff]
        %v548 = vld [vmem:[#allocation7 + $0x38] sm:$0xff]
        %v549 = vld [vmem:[#allocation7 + $0x40] sm:$0xff]
        %v550 = vld [vmem:[#allocation7 + $0x48] sm:$0xff]
        %v551 = vld [vmem:[#allocation7 + $0x50] sm:$0xff]
        %v552 = vld [vmem:[#allocation7 + $0x58] sm:$0xff]
        %v553 = vld [vmem:[#allocation7 + $0x60] sm:$0xff]
        %v554 = vld [vmem:[#allocation7 + $0x68] sm:$0xff]
        %v555 = vld [vmem:[#allocation7 + $0x70] sm:$0xff]
        %v556 = vld [vmem:[#allocation7 + $0x78] sm:$0xff]
        %v557 = vld [vmem:[#allocation7 + $0x80] sm:$0xff]
        %v558 = vld [vmem:[#allocation7 + $0x88] sm:$0xff]
        %v559 = vld [vmem:[#allocation7 + $0x90] sm:$0xff]
        %v560 = vld [vmem:[#allocation7 + $0x98] sm:$0xff]
        %v561 = vld [vmem:[#allocation7 + $0xa0] sm:$0xff]
        %v562 = vld [vmem:[#allocation7 + $0xa8] sm:$0xff]
        %v563 = vld [vmem:[#allocation7 + $0xb0] sm:$0xff]
        %v564 = vld [vmem:[#allocation7 + $0xb8] sm:$0xff]
        %v565 = vld [vmem:[#allocation7 + $0xc0] sm:$0xff]
        %v566 = vld [vmem:[#allocation7 + $0xc8] sm:$0xff]
        %v567 = vld [vmem:[#allocation7 + $0xd0] sm:$0xff]
        %v568 = vld [vmem:[#allocation7 + $0xd8] sm:$0xff]
        %v569 = vld [vmem:[#allocation7 + $0xe0] sm:$0xff]
        %v570 = vld [vmem:[#allocation7 + $0xe8] sm:$0xff]
        %v571 = vld [vmem:[#allocation7 + $0xf0] sm:$0xff]
        %v572 = vld [vmem:[#allocation7 + $0xf8] sm:$0xff]
        %v573 = vld [vmem:[%s5] sm:$0x3]
        %v575 = vperm.slane %v573, 0
        %v576 = vperm.slane %v573, 1
        %579 = vmatpush.msra.mxu0 %v571
        %580 = vmatpush.msra.mxu0 %v569
        %581 = vmatpush.msra.mxu0 %v567
        %582 = vmatpush.msra.mxu0 %v565
        %583 = vmatpush.msra.mxu0 %v563
        %584 = vmatpush.msra.mxu0 %v561
        %585 = vmatpush.msra.mxu0 %v559
        %586 = vmatpush.msra.mxu0 %v557
        %587 = vmatpush.msra.mxu0 %v555
        %588 = vmatpush.msra.mxu0 %v553
        %589 = vmatpush.msra.mxu0 %v551
        %590 = vmatpush.msra.mxu0 %v549
        %591 = vmatpush.msra.mxu0 %v547
        %592 = vmatpush.msra.mxu0 %v545
        %593 = vmatpush.msra.mxu0 %v543
        %594 = vmatpush.msra.mxu0 %v541
        %595 = vmatmul.f32.gmra.mxu0 %v539
        %v596 = vpop.f32.mrf.mxu0
        %v597 = vadd.f32 %v575, %v596
        %598 = vdwg.mxu0
        %599 = vmatpush.msra.mxu0 %v572
        %600 = vmatpush.msra.mxu0 %v570
        %601 = vmatpush.msra.mxu0 %v568
        %602 = vmatpush.msra.mxu0 %v566
        %603 = vmatpush.msra.mxu0 %v564
        %604 = vmatpush.msra.mxu0 %v562
        %605 = vmatpush.msra.mxu0 %v560
        %606 = vmatpush.msra.mxu0 %v558
        %607 = vmatpush.msra.mxu0 %v556
        %608 = vmatpush.msra.mxu0 %v554
        %609 = vmatpush.msra.mxu0 %v552
        %610 = vmatpush.msra.mxu0 %v550
        %611 = vmatpush.msra.mxu0 %v548
        %612 = vmatpush.msra.mxu0 %v546
        %613 = vmatpush.msra.mxu0 %v544
        %614 = vmatpush.msra.mxu0 %v542
        %615 = vmatmul.f32.gmra.mxu0 %v539
        %v616 = vpop.f32.mrf.mxu0
        %v617 = vadd.f32 %v576, %v616
        %618 = vdwg.mxu0
        %v619 = vmax.f32 %v597, 0.0
        %v620 = vmax.f32 %v617, 0.0
        %v621 = vmax.f32 %v619, %v620
        %622 = vst [vmem:[%s290] sm:$0xff] %v621
        %s623 = sand.u32 %s161, 1
        %s624 = scalar_lea.sflag [#allocation4], %s623
        %s625 = sand.u32 %s161, 1
        %s626 = smul.addr %s625, 8
        %s627 = scalar_lea.vmem [#allocation8], %s626
        // Predicated region
        $region57: #{tpu_custom_call.1} parent=43 // pred_check
          %p628 = pneg %p171
        $region58: #{tpu_custom_call.1} parent=43 // pred_check_branch
          %630 = sbr.rel (%p628) target = $region60
        $region59: #{tpu_custom_call.1} parent=43 // pred_region
          %632 = vsyncadd %s624, 0
          %s633 = smul.addr %s22, 8
          %s634 = scalar_lea.hbm %s6, %s633
          %s636 = sshll.u32 %s627, 4
          %s637 = int_to_ptr.vmem [resolvable:$true] %s636
          %s638 = sshll.u32 %s634, 4
          %s639 = int_to_ptr.hbm [resolvable:$true] %s638
          %641 = dma.vmem_to_hbm [thread:$0]  %s637, 128, %s639, %s624
        $region60: #{tpu_custom_call.1} parent=43 // pred_fallthru
          _
      $region44: #{tpu_custom_call.1} parent=5 // pred_fallthru
        _
      %p642 = scmp.le.s32.totalorder 2, %s17
      // Predicated region
      $region61: #{tpu_custom_call.1} parent=5 // pred_check
        %p643 = pneg %p642
      $region62: #{tpu_custom_call.1} parent=5 // pred_check_branch
        %645 = sbr.rel (%p643) target = $region64
      $region63: #{tpu_custom_call.1} parent=5 // pred_region
        %s646 = ssub.s32 %s17, 2
        // Predicated region
        $region65: #{tpu_custom_call.1} parent=63 // pred_check
          %p647 = pneg %p177
        $region66: #{tpu_custom_call.1} parent=63 // pred_check_branch
          %649 = sbr.rel (%p647) target = $region68
        $region67: #{tpu_custom_call.1} parent=63 // pred_region
          %s650 = sand.u32 %s162, 1
          %s651 = scalar_lea.sflag [#allocation4], %s650
          %s652 = sand.u32 %s162, 1
          %s653 = smul.addr %s652, 8
          %s654 = scalar_lea.vmem [#allocation8], %s653
          %656 = dma.done %s651, 128
        $region68: #{tpu_custom_call.1} parent=63 // pred_fallthru
          _
      $region64: #{tpu_custom_call.1} parent=5 // pred_fallthru
        _
    $region6: #{tpu_custom_call.1} parent=1 // loop_footer
      %s21 = sadd.s32 1, %s17
    $region7: #{tpu_custom_call.1} parent=1 // loop_footer_branch
      %16 = sbr.rel target = $region3
    $region8: #{tpu_custom_call.1} parent=1 // loop_exit
      _
    %657 = vsyncpa [#allocation3], 1
    %s658 = scalar_lea.sflag [#allocation3], 1
    %659 = vsyncpa %s658, 1
    %660 = vsyncpa [#allocation6], 1
    %661 = vsyncpa [#allocation4], 1
    %s662 = scalar_lea.sflag [#allocation4], 1
    %663 = vsyncpa %s662, 1

</llo_original>
